<compile_context>
chip_gen: v7x
topology: tpu7x:2x2x1
jax: 0.10.0
libtpu: 0.0.40
codegen_flags: <defaults>
</compile_context>

<pallas_src>
import jax
import jax.numpy as jnp
from jax.experimental import pallas as pl
from jax.experimental.pallas import tpu as pltpu


def _fused_dgl_gcn_kernel(a_ref, reid_ref, st_ref,
                          w1r_ref, w1s_ref, b1_ref,   # level-1 branch weights (lane-stacked) + bias
                          w2_ref, b2_ref,             # level-2 block-diagonal branch weights + bias
                          wc1_ref, bc1_ref,           # cat_conv1
                          wc2_ref, bc2_ref,           # cat_conv2
                          o_ref):
    f32 = jnp.float32
    a = a_ref[...]          # row-normalized adjacency  D^{-1} A  (mean aggregation)

    # ---- Level 1 (reid_conv1 || st_conv1) -----------------------------------
    # Per-branch weights are zero-padded into the shared [*, 2*nhid] lane slab,
    # so the branch stacking is just a sum of two small matmuls; one
    # aggregation matmul then serves both branches.  Bias + ReLU fused.
    xw1 = (jnp.dot(reid_ref[...], w1r_ref[...], preferred_element_type=f32)
           + jnp.dot(st_ref[...], w1s_ref[...], preferred_element_type=f32))
    h1 = jnp.maximum(jnp.dot(a, xw1, preferred_element_type=f32) + b1_ref[...], 0.0)

    # ---- Level 2 (reid_conv2 || st_conv2): block-diagonal weights -----------
    # The result IS torch.cat([reid, st], dim=-1) — already lane-dense, never
    # touches HBM.
    xw2 = jnp.dot(h1, w2_ref[...], preferred_element_type=f32)
    cat = jnp.dot(a, xw2, preferred_element_type=f32) + b2_ref[...]

    # ---- cat_conv1 + ReLU ----------------------------------------------------
    xw3 = jnp.dot(cat, wc1_ref[...], preferred_element_type=f32)
    h3 = jnp.maximum(jnp.dot(a, xw3, preferred_element_type=f32) + bc1_ref[...], 0.0)

    # ---- cat_conv2 -----------------------------------------------------------
    xw4 = jnp.dot(h3, wc2_ref[...], preferred_element_type=f32)
    out = jnp.dot(a, xw4, preferred_element_type=f32) + bc2_ref[...]

    o_ref[...] = out.astype(o_ref.dtype)


def init_params(key, reid_feature_dim, st_feature_dim, reid_nhid, st_nhid):
    """Deterministic parameter init matching the module's layer shapes."""
    out_size = int((reid_nhid + st_nhid) / 2)

    def dense(k, fan_in, fan_out):
        kw, kb = jax.random.split(k)
        scale = 1.0 / jnp.sqrt(jnp.float32(fan_in))
        w = jax.random.uniform(kw, (fan_in, fan_out), jnp.float32, -scale, scale)
        b = jax.random.uniform(kb, (1, fan_out), jnp.float32, -scale, scale)
        return w, b

    ks = jax.random.split(key, 6)
    return {
        "reid_conv1": dense(ks[0], reid_feature_dim, reid_nhid),
        "reid_conv2": dense(ks[1], reid_nhid, reid_nhid),
        "st_conv1": dense(ks[2], st_feature_dim, st_nhid),
        "st_conv2": dense(ks[3], st_nhid, st_nhid),
        "cat_conv1": dense(ks[4], reid_nhid + st_nhid, out_size),
        "cat_conv2": dense(ks[5], out_size, out_size),
    }


def prepare_fused_params(params):
    """One-time weight fusion — kept OUT of the per-call jitted forward so the
    forward is exactly one pallas_call with zero auxiliary XLA ops."""
    w_r1, b_r1 = params["reid_conv1"]
    w_r2, b_r2 = params["reid_conv2"]
    w_s1, b_s1 = params["st_conv1"]
    w_s2, b_s2 = params["st_conv2"]
    w_c1, b_c1 = params["cat_conv1"]
    w_c2, b_c2 = params["cat_conv2"]

    r_in, r_h = w_r1.shape
    s_in, s_h = w_s1.shape
    nh = r_h + s_h

    # Level-1: per-branch weights zero-padded into the shared lane slab
    # (reid -> lanes [0, r_h), st -> lanes [r_h, nh)).
    w1r = jnp.zeros((r_in, nh), jnp.float32).at[:, :r_h].set(w_r1)
    w1s = jnp.zeros((s_in, nh), jnp.float32).at[:, r_h:].set(w_s1)
    b1 = jnp.concatenate([b_r1, b_s1], axis=-1)

    # Level-2: block-diagonal so both branches ride a single MXU matmul.
    w2 = jnp.zeros((nh, nh), jnp.float32)
    w2 = w2.at[:r_h, :r_h].set(w_r2).at[r_h:, r_h:].set(w_s2)
    b2 = jnp.concatenate([b_r2, b_s2], axis=-1)

    fused = {"w1r": w1r, "w1s": w1s, "b1": b1, "w2": w2, "b2": b2,
             "wc1": w_c1, "bc1": b_c1, "wc2": w_c2, "bc2": b_c2}
    return jax.tree_util.tree_map(lambda x: jnp.asarray(x, jnp.float32), fused)


_VMEM = pl.BlockSpec(memory_space=pltpu.MemorySpace.VMEM)


@jax.jit
def dgl_gcn_forward(fused, a_norm, reid_x, st_x):
    # TODO(synk): the source forward references self.conv1 (undefined attribute)
    # for every branch conv and calls self.cat_conv2 without g; we implement the
    # intended reid_conv*/st_conv*/cat_conv* graph convolutions.
    n = reid_x.shape[0]
    out_size = fused["wc2"].shape[1]
    return pl.pallas_call(
        _fused_dgl_gcn_kernel,
        out_shape=jax.ShapeDtypeStruct((n, out_size), jnp.float32),
        in_specs=[_VMEM] * 12,
        out_specs=_VMEM,
    )(a_norm, reid_x, st_x,
      fused["w1r"], fused["w1s"], fused["b1"],
      fused["w2"], fused["b2"],
      fused["wc1"], fused["bc1"],
      fused["wc2"], fused["bc2"])


if __name__ == "__main__":
    key = jax.random.PRNGKey(0)
    k_adj, k_reid, k_st, k_par = jax.random.split(key, 4)

    N = 64                  # number of graph nodes
    reid_feature_dim = 48
    st_feature_dim = 16
    reid_nhid = 32
    st_nhid = 32            # out_size = (32 + 32) / 2 = 32
    out_size = int((reid_nhid + st_nhid) / 2)

    # Deterministic bidirected graph (symmetric dense adjacency, no self loops),
    # row-normalized ONCE for 'mean' aggregation:  A_mean = D^{-1} A.
    rand = jax.random.uniform(k_adj, (N, N))
    adj = (rand < 0.1).astype(jnp.float32)
    adj = jnp.maximum(adj, adj.T)                      # dgl.to_bidirected
    adj = adj * (1.0 - jnp.eye(N, dtype=jnp.float32))
    deg = jnp.maximum(adj.sum(axis=1, keepdims=True), 1.0)
    a_norm = (adj / deg).astype(jnp.float32)

    reid_x = jax.random.normal(k_reid, (N, reid_feature_dim), jnp.float32)
    st_x = jax.random.normal(k_st, (N, st_feature_dim), jnp.float32)

    params = init_params(k_par, reid_feature_dim, st_feature_dim, reid_nhid, st_nhid)
    fused = prepare_fused_params(params)

    out = dgl_gcn_forward(fused, a_norm, reid_x, st_x)
    out = jax.block_until_ready(out)
    assert out.shape == (N, out_size), out.shape

    # Pure-JAX reference of the same (intended) forward for a correctness check.
    def _gc(x, wb, relu):
        w, b = wb
        h = a_norm @ (x @ w) + b
        return jnp.maximum(h, 0.0) if relu else h

    r = _gc(reid_x, params["reid_conv1"], True)
    r = _gc(r, params["reid_conv2"], False)
    s = _gc(st_x, params["st_conv1"], True)
    s = _gc(s, params["st_conv2"], False)
    c = jnp.concatenate([r, s], axis=-1)
    c = _gc(c, params["cat_conv1"], True)
    ref = _gc(c, params["cat_conv2"], False)
    err = float(jnp.max(jnp.abs(out - ref)))
    assert err < 1e-4, err

    print("KERNEL_OK")
</pallas_src>

<mosaic_0001>
module attributes {stable_mosaic.version = 11 : i64} {
  func.func @_fused_dgl_gcn_kernel(%arg0: memref<64x64xf32, #tpu.memory_space<vmem>>, %arg1: memref<64x48xf32, #tpu.memory_space<vmem>>, %arg2: memref<64x16xf32, #tpu.memory_space<vmem>>, %arg3: memref<48x64xf32, #tpu.memory_space<vmem>>, %arg4: memref<16x64xf32, #tpu.memory_space<vmem>>, %arg5: memref<1x64xf32, #tpu.memory_space<vmem>>, %arg6: memref<64x64xf32, #tpu.memory_space<vmem>>, %arg7: memref<1x64xf32, #tpu.memory_space<vmem>>, %arg8: memref<64x32xf32, #tpu.memory_space<vmem>>, %arg9: memref<1x32xf32, #tpu.memory_space<vmem>>, %arg10: memref<32x32xf32, #tpu.memory_space<vmem>>, %arg11: memref<1x32xf32, #tpu.memory_space<vmem>>, %arg12: memref<64x32xf32, #tpu.memory_space<vmem>>) attributes {dimension_semantics = [], scalar_prefetch = 0 : i64, scratch_operands = 0 : i64, tpu.core_type = #tpu.core_type<tc>} {
    %c0 = arith.constant 0 : index
    %c0_0 = arith.constant 0 : index
    %0 = vector.load %arg0[%c0, %c0_0] : memref<64x64xf32, #tpu.memory_space<vmem>>, vector<64x64xf32>
    %c0_1 = arith.constant 0 : index
    %c0_2 = arith.constant 0 : index
    %1 = vector.load %arg1[%c0_1, %c0_2] : memref<64x48xf32, #tpu.memory_space<vmem>>, vector<64x48xf32>
    %c0_3 = arith.constant 0 : index
    %c0_4 = arith.constant 0 : index
    %2 = vector.load %arg3[%c0_3, %c0_4] : memref<48x64xf32, #tpu.memory_space<vmem>>, vector<48x64xf32>
    %cst = arith.constant dense<0.000000e+00> : vector<64x64xf32>
    %3 = tpu.matmul %1, %2, %cst {dimension_numbers = #tpu.dot_dimension_numbers<[1], [0], [0], [1], [0, 0, 1, 1], [], []>} : vector<64x48xf32>, vector<48x64xf32>, vector<64x64xf32> -> vector<64x64xf32>
    %c0_5 = arith.constant 0 : index
    %c0_6 = arith.constant 0 : index
    %4 = vector.load %arg2[%c0_5, %c0_6] : memref<64x16xf32, #tpu.memory_space<vmem>>, vector<64x16xf32>
    %c0_7 = arith.constant 0 : index
    %c0_8 = arith.constant 0 : index
    %5 = vector.load %arg4[%c0_7, %c0_8] : memref<16x64xf32, #tpu.memory_space<vmem>>, vector<16x64xf32>
    %cst_9 = arith.constant dense<0.000000e+00> : vector<64x64xf32>
    %6 = tpu.matmul %4, %5, %cst_9 {dimension_numbers = #tpu.dot_dimension_numbers<[1], [0], [0], [1], [0, 0, 1, 1], [], []>} : vector<64x16xf32>, vector<16x64xf32>, vector<64x64xf32> -> vector<64x64xf32>
    %7 = arith.addf %3, %6 : vector<64x64xf32>
    %cst_10 = arith.constant dense<0.000000e+00> : vector<64x64xf32>
    %8 = tpu.matmul %0, %7, %cst_10 {dimension_numbers = #tpu.dot_dimension_numbers<[1], [0], [0], [1], [0, 0, 1, 1], [], []>} : vector<64x64xf32>, vector<64x64xf32>, vector<64x64xf32> -> vector<64x64xf32>
    %c0_11 = arith.constant 0 : index
    %c0_12 = arith.constant 0 : index
    %9 = vector.load %arg5[%c0_11, %c0_12] : memref<1x64xf32, #tpu.memory_space<vmem>>, vector<1x64xf32>
    %10 = vector.broadcast %9 : vector<1x64xf32> to vector<64x64xf32>
    %11 = arith.addf %8, %10 : vector<64x64xf32>
    %cst_13 = arith.constant 0.000000e+00 : f32
    %12 = vector.broadcast %cst_13 : f32 to vector<64x64xf32>
    %13 = arith.maximumf %11, %12 : vector<64x64xf32>
    %c0_14 = arith.constant 0 : index
    %c0_15 = arith.constant 0 : index
    %14 = vector.load %arg6[%c0_14, %c0_15] : memref<64x64xf32, #tpu.memory_space<vmem>>, vector<64x64xf32>
    %cst_16 = arith.constant dense<0.000000e+00> : vector<64x64xf32>
    %15 = tpu.matmul %13, %14, %cst_16 {dimension_numbers = #tpu.dot_dimension_numbers<[1], [0], [0], [1], [0, 0, 1, 1], [], []>} : vector<64x64xf32>, vector<64x64xf32>, vector<64x64xf32> -> vector<64x64xf32>
    %cst_17 = arith.constant dense<0.000000e+00> : vector<64x64xf32>
    %16 = tpu.matmul %0, %15, %cst_17 {dimension_numbers = #tpu.dot_dimension_numbers<[1], [0], [0], [1], [0, 0, 1, 1], [], []>} : vector<64x64xf32>, vector<64x64xf32>, vector<64x64xf32> -> vector<64x64xf32>
    %c0_18 = arith.constant 0 : index
    %c0_19 = arith.constant 0 : index
    %17 = vector.load %arg7[%c0_18, %c0_19] : memref<1x64xf32, #tpu.memory_space<vmem>>, vector<1x64xf32>
    %18 = vector.broadcast %17 : vector<1x64xf32> to vector<64x64xf32>
    %19 = arith.addf %16, %18 : vector<64x64xf32>
    %c0_20 = arith.constant 0 : index
    %c0_21 = arith.constant 0 : index
    %20 = vector.load %arg8[%c0_20, %c0_21] : memref<64x32xf32, #tpu.memory_space<vmem>>, vector<64x32xf32>
    %cst_22 = arith.constant dense<0.000000e+00> : vector<64x32xf32>
    %21 = tpu.matmul %19, %20, %cst_22 {dimension_numbers = #tpu.dot_dimension_numbers<[1], [0], [0], [1], [0, 0, 1, 1], [], []>} : vector<64x64xf32>, vector<64x32xf32>, vector<64x32xf32> -> vector<64x32xf32>
    %cst_23 = arith.constant dense<0.000000e+00> : vector<64x32xf32>
    %22 = tpu.matmul %0, %21, %cst_23 {dimension_numbers = #tpu.dot_dimension_numbers<[1], [0], [0], [1], [0, 0, 1, 1], [], []>} : vector<64x64xf32>, vector<64x32xf32>, vector<64x32xf32> -> vector<64x32xf32>
    %c0_24 = arith.constant 0 : index
    %c0_25 = arith.constant 0 : index
    %23 = vector.load %arg9[%c0_24, %c0_25] : memref<1x32xf32, #tpu.memory_space<vmem>>, vector<1x32xf32>
    %24 = vector.broadcast %23 : vector<1x32xf32> to vector<64x32xf32>
    %25 = arith.addf %22, %24 : vector<64x32xf32>
    %cst_26 = arith.constant 0.000000e+00 : f32
    %26 = vector.broadcast %cst_26 : f32 to vector<64x32xf32>
    %27 = arith.maximumf %25, %26 : vector<64x32xf32>
    %c0_27 = arith.constant 0 : index
    %c0_28 = arith.constant 0 : index
    %28 = vector.load %arg10[%c0_27, %c0_28] : memref<32x32xf32, #tpu.memory_space<vmem>>, vector<32x32xf32>
    %cst_29 = arith.constant dense<0.000000e+00> : vector<64x32xf32>
    %29 = tpu.matmul %27, %28, %cst_29 {dimension_numbers = #tpu.dot_dimension_numbers<[1], [0], [0], [1], [0, 0, 1, 1], [], []>} : vector<64x32xf32>, vector<32x32xf32>, vector<64x32xf32> -> vector<64x32xf32>
    %cst_30 = arith.constant dense<0.000000e+00> : vector<64x32xf32>
    %30 = tpu.matmul %0, %29, %cst_30 {dimension_numbers = #tpu.dot_dimension_numbers<[1], [0], [0], [1], [0, 0, 1, 1], [], []>} : vector<64x64xf32>, vector<64x32xf32>, vector<64x32xf32> -> vector<64x32xf32>
    %c0_31 = arith.constant 0 : index
    %c0_32 = arith.constant 0 : index
    %31 = vector.load %arg11[%c0_31, %c0_32] : memref<1x32xf32, #tpu.memory_space<vmem>>, vector<1x32xf32>
    %32 = vector.broadcast %31 : vector<1x32xf32> to vector<64x32xf32>
    %33 = arith.addf %30, %32 : vector<64x32xf32>
    %c0_33 = arith.constant 0 : index
    %c0_34 = arith.constant 0 : index
    %34 = vector.load %arg12[%c0_33, %c0_34] : memref<64x32xf32, #tpu.memory_space<vmem>>, vector<64x32xf32>
    tpu.vector_store %arg12[%c0_33, %c0_34], %33 {strides = array<i32>} : memref<64x32xf32, #tpu.memory_space<vmem>>, vector<64x32xf32>,
    return
  }
}

</mosaic_0001>

<llo_original>
// kernel: dgl_gcn_forward.1
$region0: #{dgl_gcn_forward.1}
  #allocation0 [shape = 'u32[]', space=smem, size = 0x4, offset = 0x4, fixed_abs, tag = 'smem constant byte address 0x4 - core index']
  #allocation1 [shape = 'u32[144,128]{1,0:T(1,128)}', space=vmem, size = 0x12000, scoped, tag = 'internal scratch']
  %s0 = inlined_call_operand.vmem [shape: f32[64,64], index: 0, kind: input, shape index: {}]
  %s1 = inlined_call_operand.vmem [shape: f32[64,48], index: 1, kind: input, shape index: {}]
  %s2 = inlined_call_operand.vmem [shape: f32[64,16], index: 2, kind: input, shape index: {}]
  %s3 = inlined_call_operand.vmem [shape: f32[48,64], index: 3, kind: input, shape index: {}]
  %s4 = inlined_call_operand.vmem [shape: f32[16,64], index: 4, kind: input, shape index: {}]
  %s5 = inlined_call_operand.hbm [shape: f32[1,64], index: 5, kind: input, shape index: {}]
  %s6 = inlined_call_operand.vmem [shape: f32[64,64], index: 6, kind: input, shape index: {}]
  %s7 = inlined_call_operand.vmem [shape: f32[1,64], index: 7, kind: input, shape index: {}]
  %s8 = inlined_call_operand.vmem [shape: f32[64,32], index: 8, kind: input, shape index: {}]
  %s9 = inlined_call_operand.vmem [shape: f32[1,32], index: 9, kind: input, shape index: {}]
  %s10 = inlined_call_operand.vmem [shape: f32[32,32], index: 10, kind: input, shape index: {}]
  %s11 = inlined_call_operand.vmem [shape: f32[1,32], index: 11, kind: input, shape index: {}]
  %s12 = inlined_call_operand.vmem [shape: f32[64,32], index: 12, kind: output, shape index: {}]
  %s13 = sld [smem:[#allocation0]]
  $region62: #{dgl_gcn_forward.1} parent=0
    _
  %s15 = ssub.s32 1, %s13
  %s16 = scalar_select 0, %s15, %s13
  $region1: #{dgl_gcn_forward.1} parent=0
    #allocation2 [shape = 'u8[512]{0}', space=vmem, size = 0x400, scoped, tag = 'input window, operand 5, single buffered']
    #allocation3 [shape = 's32[1]{0}', space=sflag, size = 0x4, scoped, tag = 'scoped memory for dgl_gcn_forward.1']
    %17 = vsyncpa [#allocation3], 0
    // Predicated region
    $region2: #{dgl_gcn_forward.1} parent=1 // pred_check
      _
    $region3: #{dgl_gcn_forward.1} parent=1 // pred_check_branch
      %19 = sbr.rel (0) target = $region5
    $region4: #{dgl_gcn_forward.1} parent=1 // pred_region
      _
    $region5: #{dgl_gcn_forward.1} parent=1 // pred_fallthru
      _
    // Predicated region
    $region6: #{dgl_gcn_forward.1} parent=1 // pred_check
      _
    $region7: #{dgl_gcn_forward.1} parent=1 // pred_check_branch
      %21 = sbr.rel (0) target = $region9
    $region8: #{dgl_gcn_forward.1} parent=1 // pred_region
      _
    $region9: #{dgl_gcn_forward.1} parent=1 // pred_fallthru
      _
    // Predicated region
    $region10: #{dgl_gcn_forward.1} parent=1 // pred_check
      _
    $region11: #{dgl_gcn_forward.1} parent=1 // pred_check_branch
      %23 = sbr.rel (0) target = $region13
    $region12: #{dgl_gcn_forward.1} parent=1 // pred_region
      _
    $region13: #{dgl_gcn_forward.1} parent=1 // pred_fallthru
      _
    // Predicated region
    $region14: #{dgl_gcn_forward.1} parent=1 // pred_check
      _
    $region15: #{dgl_gcn_forward.1} parent=1 // pred_check_branch
      %25 = sbr.rel (0) target = $region17
    $region16: #{dgl_gcn_forward.1} parent=1 // pred_region
      _
    $region17: #{dgl_gcn_forward.1} parent=1 // pred_fallthru
      _
    // Predicated region
    $region18: #{dgl_gcn_forward.1} parent=1 // pred_check
      _
    $region19: #{dgl_gcn_forward.1} parent=1 // pred_check_branch
      %27 = sbr.rel (0) target = $region21
    $region20: #{dgl_gcn_forward.1} parent=1 // pred_region
      _
    $region21: #{dgl_gcn_forward.1} parent=1 // pred_fallthru
      _
    // Predicated region
    $region22: #{dgl_gcn_forward.1} parent=1 // pred_check
      _
    $region23: #{dgl_gcn_forward.1} parent=1 // pred_check_branch
      %29 = sbr.rel (0) target = $region25
    $region24: #{dgl_gcn_forward.1} parent=1 // pred_region
      %s31 = ssub.s32 16, 16
      %32 = vsyncadd [#allocation3], %s31
      %s34 = sshll.u32 [#allocation2], 4
      %s35 = int_to_ptr.vmem [resolvable:$true] %s34
      %37 = dma.hbm_to_vmem [thread:$0]  %s5, 16, %s35, [#allocation3]
    $region25: #{dgl_gcn_forward.1} parent=1 // pred_fallthru
      _
    // Predicated region
    $region26: #{dgl_gcn_forward.1} parent=1 // pred_check
      _
    $region27: #{dgl_gcn_forward.1} parent=1 // pred_check_branch
      %39 = sbr.rel (0) target = $region29
    $region28: #{dgl_gcn_forward.1} parent=1 // pred_region
      _
    $region29: #{dgl_gcn_forward.1} parent=1 // pred_fallthru
      _
    // Predicated region
    $region30: #{dgl_gcn_forward.1} parent=1 // pred_check
      _
    $region31: #{dgl_gcn_forward.1} parent=1 // pred_check_branch
      %41 = sbr.rel (0) target = $region33
    $region32: #{dgl_gcn_forward.1} parent=1 // pred_region
      _
    $region33: #{dgl_gcn_forward.1} parent=1 // pred_fallthru
      _
    // Predicated region
    $region34: #{dgl_gcn_forward.1} parent=1 // pred_check
      _
    $region35: #{dgl_gcn_forward.1} parent=1 // pred_check_branch
      %43 = sbr.rel (0) target = $region37
    $region36: #{dgl_gcn_forward.1} parent=1 // pred_region
      _
    $region37: #{dgl_gcn_forward.1} parent=1 // pred_fallthru
      _
    // Predicated region
    $region38: #{dgl_gcn_forward.1} parent=1 // pred_check
      _
    $region39: #{dgl_gcn_forward.1} parent=1 // pred_check_branch
      %45 = sbr.rel (0) target = $region41
    $region40: #{dgl_gcn_forward.1} parent=1 // pred_region
      _
    $region41: #{dgl_gcn_forward.1} parent=1 // pred_fallthru
      _
    // Predicated region
    $region42: #{dgl_gcn_forward.1} parent=1 // pred_check
      _
    $region43: #{dgl_gcn_forward.1} parent=1 // pred_check_branch
      %47 = sbr.rel (0) target = $region45
    $region44: #{dgl_gcn_forward.1} parent=1 // pred_region
      _
    $region45: #{dgl_gcn_forward.1} parent=1 // pred_fallthru
      _
    // Predicated region
    $region46: #{dgl_gcn_forward.1} parent=1 // pred_check
      _
    $region47: #{dgl_gcn_forward.1} parent=1 // pred_check_branch
      %49 = sbr.rel (0) target = $region49
    $region48: #{dgl_gcn_forward.1} parent=1 // pred_region
      _
    $region49: #{dgl_gcn_forward.1} parent=1 // pred_fallthru
      _
    // Predicated region
    $region50: #{dgl_gcn_forward.1} parent=1 // pred_check
      _
    $region51: #{dgl_gcn_forward.1} parent=1 // pred_check_branch
      %51 = sbr.rel (0) target = $region53
    $region52: #{dgl_gcn_forward.1} parent=1 // pred_region
      %52 = dma.done [#allocation3], 16
    $region53: #{dgl_gcn_forward.1} parent=1 // pred_fallthru
      _
    %v53 = vld [vmem:[%s0] sm:$0xff]
    %v54 = vld [vmem:[%s0 + $0x8] sm:$0xff]
    %v55 = vld [vmem:[%s0 + $0x10] sm:$0xff]
    %v56 = vld [vmem:[%s0 + $0x18] sm:$0xff]
    %v57 = vld [vmem:[%s0 + $0x20] sm:$0xff]
    %v58 = vld [vmem:[%s0 + $0x28] sm:$0xff]
    %v59 = vld [vmem:[%s0 + $0x30] sm:$0xff]
    %v60 = vld [vmem:[%s0 + $0x38] sm:$0xff]
    %v61 = vld [vmem:[%s1] sm:$0xff]
    %v62 = vld [vmem:[%s1 + $0x8] sm:$0xff]
    %v63 = vld [vmem:[%s1 + $0x10] sm:$0xff]
    %v64 = vld [vmem:[%s1 + $0x18] sm:$0xff]
    %v65 = vld [vmem:[%s1 + $0x20] sm:$0xff]
    %v66 = vld [vmem:[%s1 + $0x28] sm:$0xff]
    %v67 = vld [vmem:[%s1 + $0x30] sm:$0xff]
    %v68 = vld [vmem:[%s1 + $0x38] sm:$0xff]
    %v69 = vld [vmem:[%s3] sm:$0xff]
    %v70 = vld [vmem:[%s3 + $0x8] sm:$0xff]
    %v71 = vld [vmem:[%s3 + $0x10] sm:$0xff]
    %v72 = vld [vmem:[%s3 + $0x18] sm:$0xff]
    %v73 = vld [vmem:[%s3 + $0x20] sm:$0xff]
    %v74 = vld [vmem:[%s3 + $0x28] sm:$0xff]
    %v75 = vld [vmem:[%s2] sm:$0xff]
    %v76 = vld [vmem:[%s2 + $0x8] sm:$0xff]
    %v77 = vld [vmem:[%s2 + $0x10] sm:$0xff]
    %v78 = vld [vmem:[%s2 + $0x18] sm:$0xff]
    %v79 = vld [vmem:[%s2 + $0x20] sm:$0xff]
    %v80 = vld [vmem:[%s2 + $0x28] sm:$0xff]
    %v81 = vld [vmem:[%s2 + $0x30] sm:$0xff]
    %v82 = vld [vmem:[%s2 + $0x38] sm:$0xff]
    %v83 = vld [vmem:[%s4] sm:$0xff]
    %v84 = vld [vmem:[%s4 + $0x8] sm:$0xff]
    %vm85 = vcmask 130048
    %v87 = vsel %vm85, %v75, 0
    %v90 = vsel %vm85, %v76, 0
    %v93 = vsel %vm85, %v77, 0
    %v96 = vsel %vm85, %v78, 0
    %v99 = vsel %vm85, %v79, 0
    %v102 = vsel %vm85, %v80, 0
    %v105 = vsel %vm85, %v81, 0
    %v108 = vsel %vm85, %v82, 0
    %110 = vmatprep.subr.mxu0 0.0
    %111 = vmatpush1.msra.mxu0 %v83
    %112 = vmatprep.subr.mxu0 0.0
    %113 = vmatpush1.msra.mxu0 %v84
    %114 = vmatprep.subr.mxu0 0.0
    %115 = vmatpush1.msra.mxu0 0.0
    %116 = vmatprep.subr.mxu0 0.0
    %117 = vmatpush1.msra.mxu0 0.0
    %118 = vmatprep.subr.mxu0 0.0
    %119 = vmatpush1.msra.mxu0 0.0
    %120 = vmatprep.subr.mxu0 0.0
    %121 = vmatpush1.msra.mxu0 0.0
    %122 = vmatprep.subr.mxu0 0.0
    %123 = vmatpush1.msra.mxu0 0.0
    %124 = vmatprep.subr.mxu0 0.0
    %125 = vmatpush1.msra.mxu0 0.0
    %126 = vmatprep.subr.mxu0 0.0
    %127 = vmatpush1.msra.mxu0 0.0
    %128 = vmatprep.subr.mxu0 0.0
    %129 = vmatpush1.msra.mxu0 0.0
    %130 = vmatprep.subr.mxu0 0.0
    %131 = vmatpush1.msra.mxu0 0.0
    %132 = vmatprep.subr.mxu0 0.0
    %133 = vmatpush1.msra.mxu0 0.0
    %134 = vmatprep.subr.mxu0 0.0
    %135 = vmatpush1.msra.mxu0 0.0
    %136 = vmatprep.subr.mxu0 0.0
    %137 = vmatpush1.msra.mxu0 0.0
    %138 = vmatprep.subr.mxu0 0.0
    %139 = vmatpush1.msra.mxu0 0.0
    %140 = vmatprep.subr.mxu0 0.0
    %141 = vmatpush1.msra.mxu0 0.0
    %142 = vmatprep.subr.mxu0 0.0
    %143 = vmatpush1.msra.mxu0 0.0
    %144 = vmatprep.subr.mxu0 0.0
    %145 = vmatpush1.msra.mxu0 0.0
    %146 = vmatprep.subr.mxu0 0.0
    %147 = vmatpush1.msra.mxu0 0.0
    %148 = vmatprep.subr.mxu0 0.0
    %149 = vmatpush1.msra.mxu0 0.0
    %150 = vmatprep.subr.mxu0 0.0
    %151 = vmatpush1.msra.mxu0 0.0
    %152 = vmatprep.subr.mxu0 0.0
    %153 = vmatpush1.msra.mxu0 0.0
    %154 = vmatprep.subr.mxu0 0.0
    %155 = vmatpush1.msra.mxu0 0.0
    %156 = vmatprep.subr.mxu0 0.0
    %157 = vmatpush1.msra.mxu0 0.0
    %158 = vmatprep.subr.mxu0 0.0
    %159 = vmatpush1.msra.mxu0 0.0
    %160 = vmatprep.subr.mxu0 0.0
    %161 = vmatpush1.msra.mxu0 0.0
    %162 = vmatprep.subr.mxu0 0.0
    %163 = vmatpush1.msra.mxu0 0.0
    %164 = vmatprep.subr.mxu0 0.0
    %165 = vmatpush1.msra.mxu0 0.0
    %166 = vmatprep.subr.mxu0 0.0
    %167 = vmatpush1.msra.mxu0 0.0
    %168 = vmatprep.subr.mxu0 0.0
    %169 = vmatpush1.msra.mxu0 0.0
    %170 = vmatprep.subr.mxu0 0.0
    %171 = vmatpush1.msra.mxu0 0.0
    %172 = vmatprep.subr.mxu0 0.0
    %173 = vmatpush1.msra.mxu0 0.0
    %174 = vmatprep.mubr.f32.mxu0 0.0
    %175 = vmatmul.mubr.f32.gmra.mrb[0].mxu0 %v87
    %v176 = vpop.f32.mrb[0].mxu0
    %v177 = vadd.f32 0.0, %v176
    %v178 = vpop.f32.mrb[0].mxu0
    %179 = vmatprep.mubr.f32.mxu0 0.0
    %180 = vmatmul.mubr.f32.gmra.mrb[0].mxu0 %v90
    %v181 = vpop.f32.mrb[0].mxu0
    %v182 = vadd.f32 0.0, %v181
    %v183 = vpop.f32.mrb[0].mxu0
    %184 = vmatprep.mubr.f32.mxu0 0.0
    %185 = vmatmul.mubr.f32.gmra.mrb[0].mxu0 %v93
    %v186 = vpop.f32.mrb[0].mxu0
    %v187 = vadd.f32 0.0, %v186
    %v188 = vpop.f32.mrb[0].mxu0
    %189 = vmatprep.mubr.f32.mxu0 0.0
    %190 = vmatmul.mubr.f32.gmra.mrb[0].mxu0 %v96
    %v191 = vpop.f32.mrb[0].mxu0
    %v192 = vadd.f32 0.0, %v191
    %v193 = vpop.f32.mrb[0].mxu0
    %194 = vmatprep.mubr.f32.mxu0 0.0
    %195 = vmatmul.mubr.f32.gmra.mrb[0].mxu0 %v99
    %v196 = vpop.f32.mrb[0].mxu0
    %v197 = vadd.f32 0.0, %v196
    %v198 = vpop.f32.mrb[0].mxu0
    %199 = vmatprep.mubr.f32.mxu0 0.0
    %200 = vmatmul.mubr.f32.gmra.mrb[0].mxu0 %v102
    %v201 = vpop.f32.mrb[0].mxu0
    %v202 = vadd.f32 0.0, %v201
    %v203 = vpop.f32.mrb[0].mxu0
    %204 = vmatprep.mubr.f32.mxu0 0.0
    %205 = vmatmul.mubr.f32.gmra.mrb[0].mxu0 %v105
    %v206 = vpop.f32.mrb[0].mxu0
    %v207 = vadd.f32 0.0, %v206
    %v208 = vpop.f32.mrb[0].mxu0
    %209 = vmatprep.mubr.f32.mxu0 0.0
    %210 = vmatmul.mubr.f32.gmra.mrb[0].mxu0 %v108
    %v211 = vpop.f32.mrb[0].mxu0
    %v212 = vadd.f32 0.0, %v211
    %v213 = vpop.f32.mrb[0].mxu0
    %214 = vdwg.mxu0
    %vm215 = vcmask 392192
    %v217 = vsel %vm215, %v61, 0
    %v220 = vsel %vm215, %v62, 0
    %v223 = vsel %vm215, %v63, 0
    %v226 = vsel %vm215, %v64, 0
    %v229 = vsel %vm215, %v65, 0
    %v232 = vsel %vm215, %v66, 0
    %v235 = vsel %vm215, %v67, 0
    %v238 = vsel %vm215, %v68, 0
    %240 = vmatprep.subr.mxu0 0.0
    %241 = vmatpush1.msra.mxu0 %v69
    %242 = vmatprep.subr.mxu0 0.0
    %243 = vmatpush1.msra.mxu0 %v70
    %244 = vmatprep.subr.mxu0 0.0
    %245 = vmatpush1.msra.mxu0 %v71
    %246 = vmatprep.subr.mxu0 0.0
    %247 = vmatpush1.msra.mxu0 %v72
    %248 = vmatprep.subr.mxu0 0.0
    %249 = vmatpush1.msra.mxu0 %v73
    %250 = vmatprep.subr.mxu0 0.0
    %251 = vmatpush1.msra.mxu0 %v74
    %252 = vmatprep.subr.mxu0 0.0
    %253 = vmatpush1.msra.mxu0 0.0
    %254 = vmatprep.subr.mxu0 0.0
    %255 = vmatpush1.msra.mxu0 0.0
    %256 = vmatprep.subr.mxu0 0.0
    %257 = vmatpush1.msra.mxu0 0.0
    %258 = vmatprep.subr.mxu0 0.0
    %259 = vmatpush1.msra.mxu0 0.0
    %260 = vmatprep.subr.mxu0 0.0
    %261 = vmatpush1.msra.mxu0 0.0
    %262 = vmatprep.subr.mxu0 0.0
    %263 = vmatpush1.msra.mxu0 0.0
    %264 = vmatprep.subr.mxu0 0.0
    %265 = vmatpush1.msra.mxu0 0.0
    %266 = vmatprep.subr.mxu0 0.0
    %267 = vmatpush1.msra.mxu0 0.0
    %268 = vmatprep.subr.mxu0 0.0
    %269 = vmatpush1.msra.mxu0 0.0
    %270 = vmatprep.subr.mxu0 0.0
    %271 = vmatpush1.msra.mxu0 0.0
    %272 = vmatprep.subr.mxu0 0.0
    %273 = vmatpush1.msra.mxu0 0.0
    %274 = vmatprep.subr.mxu0 0.0
    %275 = vmatpush1.msra.mxu0 0.0
    %276 = vmatprep.subr.mxu0 0.0
    %277 = vmatpush1.msra.mxu0 0.0
    %278 = vmatprep.subr.mxu0 0.0
    %279 = vmatpush1.msra.mxu0 0.0
    %280 = vmatprep.subr.mxu0 0.0
    %281 = vmatpush1.msra.mxu0 0.0
    %282 = vmatprep.subr.mxu0 0.0
    %283 = vmatpush1.msra.mxu0 0.0
    %284 = vmatprep.subr.mxu0 0.0
    %285 = vmatpush1.msra.mxu0 0.0
    %286 = vmatprep.subr.mxu0 0.0
    %287 = vmatpush1.msra.mxu0 0.0
    %288 = vmatprep.subr.mxu0 0.0
    %289 = vmatpush1.msra.mxu0 0.0
    %290 = vmatprep.subr.mxu0 0.0
    %291 = vmatpush1.msra.mxu0 0.0
    %292 = vmatprep.subr.mxu0 0.0
    %293 = vmatpush1.msra.mxu0 0.0
    %294 = vmatprep.subr.mxu0 0.0
    %295 = vmatpush1.msra.mxu0 0.0
    %296 = vmatprep.subr.mxu0 0.0
    %297 = vmatpush1.msra.mxu0 0.0
    %298 = vmatprep.subr.mxu0 0.0
    %299 = vmatpush1.msra.mxu0 0.0
    %300 = vmatprep.subr.mxu0 0.0
    %301 = vmatpush1.msra.mxu0 0.0
    %302 = vmatprep.subr.mxu0 0.0
    %303 = vmatpush1.msra.mxu0 0.0
    %304 = vmatprep.mubr.f32.mxu0 0.0
    %305 = vmatmul.mubr.f32.gmra.mrb[0].mxu0 %v217
    %v306 = vpop.f32.mrb[0].mxu0
    %v307 = vadd.f32 %v177, %v306
    %v308 = vpop.f32.mrb[0].mxu0
    %309 = vmatprep.mubr.f32.mxu0 0.0
    %310 = vmatmul.mubr.f32.gmra.mrb[0].mxu0 %v220
    %v311 = vpop.f32.mrb[0].mxu0
    %v312 = vadd.f32 %v182, %v311
    %v313 = vpop.f32.mrb[0].mxu0
    %314 = vmatprep.mubr.f32.mxu0 0.0
    %315 = vmatmul.mubr.f32.gmra.mrb[0].mxu0 %v223
    %v316 = vpop.f32.mrb[0].mxu0
    %v317 = vadd.f32 %v187, %v316
    %v318 = vpop.f32.mrb[0].mxu0
    %319 = vmatprep.mubr.f32.mxu0 0.0
    %320 = vmatmul.mubr.f32.gmra.mrb[0].mxu0 %v226
    %v321 = vpop.f32.mrb[0].mxu0
    %v322 = vadd.f32 %v192, %v321
    %v323 = vpop.f32.mrb[0].mxu0
    %324 = vmatprep.mubr.f32.mxu0 0.0
    %325 = vmatmul.mubr.f32.gmra.mrb[0].mxu0 %v229
    %v326 = vpop.f32.mrb[0].mxu0
    %v327 = vadd.f32 %v197, %v326
    %v328 = vpop.f32.mrb[0].mxu0
    %329 = vmatprep.mubr.f32.mxu0 0.0
    %330 = vmatmul.mubr.f32.gmra.mrb[0].mxu0 %v232
    %v331 = vpop.f32.mrb[0].mxu0
    %v332 = vadd.f32 %v202, %v331
    %v333 = vpop.f32.mrb[0].mxu0
    %334 = vmatprep.mubr.f32.mxu0 0.0
    %335 = vmatmul.mubr.f32.gmra.mrb[0].mxu0 %v235
    %v336 = vpop.f32.mrb[0].mxu0
    %v337 = vadd.f32 %v207, %v336
    %v338 = vpop.f32.mrb[0].mxu0
    %339 = vmatprep.mubr.f32.mxu0 0.0
    %340 = vmatmul.mubr.f32.gmra.mrb[0].mxu0 %v238
    %v341 = vpop.f32.mrb[0].mxu0
    %v342 = vadd.f32 %v212, %v341
    %v343 = vpop.f32.mrb[0].mxu0
    %344 = vdwg.mxu0
    %v345 = vld [vmem:[#allocation2] sm:$0x1]
    %v347 = vlaneseq
    %v348 = vshrl.u32 %v347, 7
    %v349 = vsub.s32 0, %v348
    %v350 = vrot.slane %v345, %v349
    %vm352 = vcmask 523264
    %v354 = vsel %vm352, %v53, 0
    %v357 = vsel %vm352, %v54, 0
    %v360 = vsel %vm352, %v55, 0
    %v363 = vsel %vm352, %v56, 0
    %v366 = vsel %vm352, %v57, 0
    %v369 = vsel %vm352, %v58, 0
    %v372 = vsel %vm352, %v59, 0
    %v375 = vsel %vm352, %v60, 0
    %377 = vmatprep.subr.mxu0 0.0
    %378 = vmatpush1.msra.mxu0 %v307
    %379 = vmatprep.subr.mxu0 0.0
    %380 = vmatpush1.msra.mxu0 %v312
    %381 = vmatprep.subr.mxu0 0.0
    %382 = vmatpush1.msra.mxu0 %v317
    %383 = vmatprep.subr.mxu0 0.0
    %384 = vmatpush1.msra.mxu0 %v322
    %385 = vmatprep.subr.mxu0 0.0
    %386 = vmatpush1.msra.mxu0 %v327
    %387 = vmatprep.subr.mxu0 0.0
    %388 = vmatpush1.msra.mxu0 %v332
    %389 = vmatprep.subr.mxu0 0.0
    %390 = vmatpush1.msra.mxu0 %v337
    %391 = vmatprep.subr.mxu0 0.0
    %392 = vmatpush1.msra.mxu0 %v342
    %393 = vmatprep.subr.mxu0 0.0
    %394 = vmatpush1.msra.mxu0 0.0
    %395 = vmatprep.subr.mxu0 0.0
    %396 = vmatpush1.msra.mxu0 0.0
    %397 = vmatprep.subr.mxu0 0.0
    %398 = vmatpush1.msra.mxu0 0.0
    %399 = vmatprep.subr.mxu0 0.0
    %400 = vmatpush1.msra.mxu0 0.0
    %401 = vmatprep.subr.mxu0 0.0
    %402 = vmatpush1.msra.mxu0 0.0
    %403 = vmatprep.subr.mxu0 0.0
    %404 = vmatpush1.msra.mxu0 0.0
    %405 = vmatprep.subr.mxu0 0.0
    %406 = vmatpush1.msra.mxu0 0.0
    %407 = vmatprep.subr.mxu0 0.0
    %408 = vmatpush1.msra.mxu0 0.0
    %409 = vmatprep.subr.mxu0 0.0
    %410 = vmatpush1.msra.mxu0 0.0
    %411 = vmatprep.subr.mxu0 0.0
    %412 = vmatpush1.msra.mxu0 0.0
    %413 = vmatprep.subr.mxu0 0.0
    %414 = vmatpush1.msra.mxu0 0.0
    %415 = vmatprep.subr.mxu0 0.0
    %416 = vmatpush1.msra.mxu0 0.0
    %417 = vmatprep.subr.mxu0 0.0
    %418 = vmatpush1.msra.mxu0 0.0
    %419 = vmatprep.subr.mxu0 0.0
    %420 = vmatpush1.msra.mxu0 0.0
    %421 = vmatprep.subr.mxu0 0.0
    %422 = vmatpush1.msra.mxu0 0.0
    %423 = vmatprep.subr.mxu0 0.0
    %424 = vmatpush1.msra.mxu0 0.0
    %425 = vmatprep.subr.mxu0 0.0
    %426 = vmatpush1.msra.mxu0 0.0
    %427 = vmatprep.subr.mxu0 0.0
    %428 = vmatpush1.msra.mxu0 0.0
    %429 = vmatprep.subr.mxu0 0.0
    %430 = vmatpush1.msra.mxu0 0.0
    %431 = vmatprep.subr.mxu0 0.0
    %432 = vmatpush1.msra.mxu0 0.0
    %433 = vmatprep.subr.mxu0 0.0
    %434 = vmatpush1.msra.mxu0 0.0
    %435 = vmatprep.subr.mxu0 0.0
    %436 = vmatpush1.msra.mxu0 0.0
    %437 = vmatprep.subr.mxu0 0.0
    %438 = vmatpush1.msra.mxu0 0.0
    %439 = vmatprep.subr.mxu0 0.0
    %440 = vmatpush1.msra.mxu0 0.0
    %441 = vmatprep.mubr.f32.mxu0 0.0
    %442 = vmatmul.mubr.f32.gmra.mrb[0].mxu0 %v354
    %v443 = vpop.f32.mrb[0].mxu0
    %v444 = vadd.f32 %v350, %v443
    %v445 = vpop.f32.mrb[0].mxu0
    %446 = vmatprep.mubr.f32.mxu0 0.0
    %447 = vmatmul.mubr.f32.gmra.mrb[0].mxu0 %v357
    %v448 = vpop.f32.mrb[0].mxu0
    %v449 = vadd.f32 %v350, %v448
    %v450 = vpop.f32.mrb[0].mxu0
    %451 = vmatprep.mubr.f32.mxu0 0.0
    %452 = vmatmul.mubr.f32.gmra.mrb[0].mxu0 %v360
    %v453 = vpop.f32.mrb[0].mxu0
    %v454 = vadd.f32 %v350, %v453
    %v455 = vpop.f32.mrb[0].mxu0
    %456 = vmatprep.mubr.f32.mxu0 0.0
    %457 = vmatmul.mubr.f32.gmra.mrb[0].mxu0 %v363
    %v458 = vpop.f32.mrb[0].mxu0
    %v459 = vadd.f32 %v350, %v458
    %v460 = vpop.f32.mrb[0].mxu0
    %461 = vmatprep.mubr.f32.mxu0 0.0
    %462 = vmatmul.mubr.f32.gmra.mrb[0].mxu0 %v366
    %v463 = vpop.f32.mrb[0].mxu0
    %v464 = vadd.f32 %v350, %v463
    %v465 = vpop.f32.mrb[0].mxu0
    %466 = vmatprep.mubr.f32.mxu0 0.0
    %467 = vmatmul.mubr.f32.gmra.mrb[0].mxu0 %v369
    %v468 = vpop.f32.mrb[0].mxu0
    %v469 = vadd.f32 %v350, %v468
    %v470 = vpop.f32.mrb[0].mxu0
    %471 = vmatprep.mubr.f32.mxu0 0.0
    %472 = vmatmul.mubr.f32.gmra.mrb[0].mxu0 %v372
    %v473 = vpop.f32.mrb[0].mxu0
    %v474 = vadd.f32 %v350, %v473
    %v475 = vpop.f32.mrb[0].mxu0
    %476 = vmatprep.mubr.f32.mxu0 0.0
    %477 = vmatmul.mubr.f32.gmra.mrb[0].mxu0 %v375
    %v478 = vpop.f32.mrb[0].mxu0
    %v479 = vadd.f32 %v350, %v478
    %v480 = vpop.f32.mrb[0].mxu0
    %481 = vdwg.mxu0
    %v482 = vmax.f32 %v444, 0.0
    %v483 = vmax.f32 %v449, 0.0
    %v484 = vmax.f32 %v454, 0.0
    %v485 = vmax.f32 %v459, 0.0
    %v486 = vmax.f32 %v464, 0.0
    %v487 = vmax.f32 %v469, 0.0
    %v488 = vmax.f32 %v474, 0.0
    %v489 = vmax.f32 %v479, 0.0
    %v490 = vld [vmem:[%s6] sm:$0xff]
    %v491 = vld [vmem:[%s6 + $0x8] sm:$0xff]
    %v492 = vld [vmem:[%s6 + $0x10] sm:$0xff]
    %v493 = vld [vmem:[%s6 + $0x18] sm:$0xff]
    %v494 = vld [vmem:[%s6 + $0x20] sm:$0xff]
    %v495 = vld [vmem:[%s6 + $0x28] sm:$0xff]
    %v496 = vld [vmem:[%s6 + $0x30] sm:$0xff]
    %v497 = vld [vmem:[%s6 + $0x38] sm:$0xff]
    %v499 = vsel %vm352, %v482, 0
    %v502 = vsel %vm352, %v483, 0
    %v505 = vsel %vm352, %v484, 0
    %v508 = vsel %vm352, %v485, 0
    %v511 = vsel %vm352, %v486, 0
    %v514 = vsel %vm352, %v487, 0
    %v517 = vsel %vm352, %v488, 0
    %v520 = vsel %vm352, %v489, 0
    %522 = vmatprep.subr.mxu0 0.0
    %523 = vmatpush1.msra.mxu0 %v490
    %524 = vmatprep.subr.mxu0 0.0
    %525 = vmatpush1.msra.mxu0 %v491
    %526 = vmatprep.subr.mxu0 0.0
    %527 = vmatpush1.msra.mxu0 %v492
    %528 = vmatprep.subr.mxu0 0.0
    %529 = vmatpush1.msra.mxu0 %v493
    %530 = vmatprep.subr.mxu0 0.0
    %531 = vmatpush1.msra.mxu0 %v494
    %532 = vmatprep.subr.mxu0 0.0
    %533 = vmatpush1.msra.mxu0 %v495
    %534 = vmatprep.subr.mxu0 0.0
    %535 = vmatpush1.msra.mxu0 %v496
    %536 = vmatprep.subr.mxu0 0.0
    %537 = vmatpush1.msra.mxu0 %v497
    %538 = vmatprep.subr.mxu0 0.0
    %539 = vmatpush1.msra.mxu0 0.0
    %540 = vmatprep.subr.mxu0 0.0
    %541 = vmatpush1.msra.mxu0 0.0
    %542 = vmatprep.subr.mxu0 0.0
    %543 = vmatpush1.msra.mxu0 0.0
    %544 = vmatprep.subr.mxu0 0.0
    %545 = vmatpush1.msra.mxu0 0.0
    %546 = vmatprep.subr.mxu0 0.0
    %547 = vmatpush1.msra.mxu0 0.0
    %548 = vmatprep.subr.mxu0 0.0
    %549 = vmatpush1.msra.mxu0 0.0
    %550 = vmatprep.subr.mxu0 0.0
    %551 = vmatpush1.msra.mxu0 0.0
    %552 = vmatprep.subr.mxu0 0.0
    %553 = vmatpush1.msra.mxu0 0.0
    %554 = vmatprep.subr.mxu0 0.0
    %555 = vmatpush1.msra.mxu0 0.0
    %556 = vmatprep.subr.mxu0 0.0
    %557 = vmatpush1.msra.mxu0 0.0
    %558 = vmatprep.subr.mxu0 0.0
    %559 = vmatpush1.msra.mxu0 0.0
    %560 = vmatprep.subr.mxu0 0.0
    %561 = vmatpush1.msra.mxu0 0.0
    %562 = vmatprep.subr.mxu0 0.0
    %563 = vmatpush1.msra.mxu0 0.0
    %564 = vmatprep.subr.mxu0 0.0
    %565 = vmatpush1.msra.mxu0 0.0
    %566 = vmatprep.subr.mxu0 0.0
    %567 = vmatpush1.msra.mxu0 0.0
    %568 = vmatprep.subr.mxu0 0.0
    %569 = vmatpush1.msra.mxu0 0.0
    %570 = vmatprep.subr.mxu0 0.0
    %571 = vmatpush1.msra.mxu0 0.0
    %572 = vmatprep.subr.mxu0 0.0
    %573 = vmatpush1.msra.mxu0 0.0
    %574 = vmatprep.subr.mxu0 0.0
    %575 = vmatpush1.msra.mxu0 0.0
    %576 = vmatprep.subr.mxu0 0.0
    %577 = vmatpush1.msra.mxu0 0.0
    %578 = vmatprep.subr.mxu0 0.0
    %579 = vmatpush1.msra.mxu0 0.0
    %580 = vmatprep.subr.mxu0 0.0
    %581 = vmatpush1.msra.mxu0 0.0
    %582 = vmatprep.subr.mxu0 0.0
    %583 = vmatpush1.msra.mxu0 0.0
    %584 = vmatprep.subr.mxu0 0.0
    %585 = vmatpush1.msra.mxu0 0.0
    %586 = vmatprep.mubr.f32.mxu0 0.0
    %587 = vmatmul.mubr.f32.gmra.mrb[0].mxu0 %v499
    %v588 = vpop.f32.mrb[0].mxu0
    %v589 = vadd.f32 0.0, %v588
    %v590 = vpop.f32.mrb[0].mxu0
    %591 = vmatprep.mubr.f32.mxu0 0.0
    %592 = vmatmul.mubr.f32.gmra.mrb[0].mxu0 %v502
    %v593 = vpop.f32.mrb[0].mxu0
    %v594 = vadd.f32 0.0, %v593
    %v595 = vpop.f32.mrb[0].mxu0
    %596 = vmatprep.mubr.f32.mxu0 0.0
    %597 = vmatmul.mubr.f32.gmra.mrb[0].mxu0 %v505
    %v598 = vpop.f32.mrb[0].mxu0
    %v599 = vadd.f32 0.0, %v598
    %v600 = vpop.f32.mrb[0].mxu0
    %601 = vmatprep.mubr.f32.mxu0 0.0
    %602 = vmatmul.mubr.f32.gmra.mrb[0].mxu0 %v508
    %v603 = vpop.f32.mrb[0].mxu0
    %v604 = vadd.f32 0.0, %v603
    %v605 = vpop.f32.mrb[0].mxu0
    %606 = vmatprep.mubr.f32.mxu0 0.0
    %607 = vmatmul.mubr.f32.gmra.mrb[0].mxu0 %v511
    %v608 = vpop.f32.mrb[0].mxu0
    %v609 = vadd.f32 0.0, %v608
    %v610 = vpop.f32.mrb[0].mxu0
    %611 = vmatprep.mubr.f32.mxu0 0.0
    %612 = vmatmul.mubr.f32.gmra.mrb[0].mxu0 %v514
    %v613 = vpop.f32.mrb[0].mxu0
    %v614 = vadd.f32 0.0, %v613
    %v615 = vpop.f32.mrb[0].mxu0
    %616 = vmatprep.mubr.f32.mxu0 0.0
    %617 = vmatmul.mubr.f32.gmra.mrb[0].mxu0 %v517
    %v618 = vpop.f32.mrb[0].mxu0
    %v619 = vadd.f32 0.0, %v618
    %v620 = vpop.f32.mrb[0].mxu0
    %621 = vmatprep.mubr.f32.mxu0 0.0
    %622 = vmatmul.mubr.f32.gmra.mrb[0].mxu0 %v520
    %v623 = vpop.f32.mrb[0].mxu0
    %v624 = vadd.f32 0.0, %v623
    %v625 = vpop.f32.mrb[0].mxu0
    %626 = vdwg.mxu0
    %v627 = vld [vmem:[%s7] sm:$0x1]
    %v629 = vlaneseq
    %v630 = vshrl.u32 %v629, 7
    %v631 = vsub.s32 0, %v630
    %v632 = vrot.slane %v627, %v631
    %634 = vmatprep.subr.mxu0 0.0
    %635 = vmatpush1.msra.mxu0 %v589
    %636 = vmatprep.subr.mxu0 0.0
    %637 = vmatpush1.msra.mxu0 %v594
    %638 = vmatprep.subr.mxu0 0.0
    %639 = vmatpush1.msra.mxu0 %v599
    %640 = vmatprep.subr.mxu0 0.0
    %641 = vmatpush1.msra.mxu0 %v604
    %642 = vmatprep.subr.mxu0 0.0
    %643 = vmatpush1.msra.mxu0 %v609
    %644 = vmatprep.subr.mxu0 0.0
    %645 = vmatpush1.msra.mxu0 %v614
    %646 = vmatprep.subr.mxu0 0.0
    %647 = vmatpush1.msra.mxu0 %v619
    %648 = vmatprep.subr.mxu0 0.0
    %649 = vmatpush1.msra.mxu0 %v624
    %650 = vmatprep.subr.mxu0 0.0
    %651 = vmatpush1.msra.mxu0 0.0
    %652 = vmatprep.subr.mxu0 0.0
    %653 = vmatpush1.msra.mxu0 0.0
    %654 = vmatprep.subr.mxu0 0.0
    %655 = vmatpush1.msra.mxu0 0.0
    %656 = vmatprep.subr.mxu0 0.0
    %657 = vmatpush1.msra.mxu0 0.0
    %658 = vmatprep.subr.mxu0 0.0
    %659 = vmatpush1.msra.mxu0 0.0
    %660 = vmatprep.subr.mxu0 0.0
    %661 = vmatpush1.msra.mxu0 0.0
    %662 = vmatprep.subr.mxu0 0.0
    %663 = vmatpush1.msra.mxu0 0.0
    %664 = vmatprep.subr.mxu0 0.0
    %665 = vmatpush1.msra.mxu0 0.0
    %666 = vmatprep.subr.mxu0 0.0
    %667 = vmatpush1.msra.mxu0 0.0
    %668 = vmatprep.subr.mxu0 0.0
    %669 = vmatpush1.msra.mxu0 0.0
    %670 = vmatprep.subr.mxu0 0.0
    %671 = vmatpush1.msra.mxu0 0.0
    %672 = vmatprep.subr.mxu0 0.0
    %673 = vmatpush1.msra.mxu0 0.0
    %674 = vmatprep.subr.mxu0 0.0
    %675 = vmatpush1.msra.mxu0 0.0
    %676 = vmatprep.subr.mxu0 0.0
    %677 = vmatpush1.msra.mxu0 0.0
    %678 = vmatprep.subr.mxu0 0.0
    %679 = vmatpush1.msra.mxu0 0.0
    %680 = vmatprep.subr.mxu0 0.0
    %681 = vmatpush1.msra.mxu0 0.0
    %682 = vmatprep.subr.mxu0 0.0
    %683 = vmatpush1.msra.mxu0 0.0
    %684 = vmatprep.subr.mxu0 0.0
    %685 = vmatpush1.msra.mxu0 0.0
    %686 = vmatprep.subr.mxu0 0.0
    %687 = vmatpush1.msra.mxu0 0.0
    %688 = vmatprep.subr.mxu0 0.0
    %689 = vmatpush1.msra.mxu0 0.0
    %690 = vmatprep.subr.mxu0 0.0
    %691 = vmatpush1.msra.mxu0 0.0
    %692 = vmatprep.subr.mxu0 0.0
    %693 = vmatpush1.msra.mxu0 0.0
    %694 = vmatprep.subr.mxu0 0.0
    %695 = vmatpush1.msra.mxu0 0.0
    %696 = vmatprep.subr.mxu0 0.0
    %697 = vmatpush1.msra.mxu0 0.0
    %698 = vmatprep.mubr.f32.mxu0 0.0
    %699 = vmatmul.mubr.f32.gmra.mrb[0].mxu0 %v354
    %v700 = vpop.f32.mrb[0].mxu0
    %v701 = vadd.f32 %v632, %v700
    %v702 = vpop.f32.mrb[0].mxu0
    %703 = vmatprep.mubr.f32.mxu0 0.0
    %704 = vmatmul.mubr.f32.gmra.mrb[0].mxu0 %v357
    %v705 = vpop.f32.mrb[0].mxu0
    %v706 = vadd.f32 %v632, %v705
    %v707 = vpop.f32.mrb[0].mxu0
    %708 = vmatprep.mubr.f32.mxu0 0.0
    %709 = vmatmul.mubr.f32.gmra.mrb[0].mxu0 %v360
    %v710 = vpop.f32.mrb[0].mxu0
    %v711 = vadd.f32 %v632, %v710
    %v712 = vpop.f32.mrb[0].mxu0
    %713 = vmatprep.mubr.f32.mxu0 0.0
    %714 = vmatmul.mubr.f32.gmra.mrb[0].mxu0 %v363
    %v715 = vpop.f32.mrb[0].mxu0
    %v716 = vadd.f32 %v632, %v715
    %v717 = vpop.f32.mrb[0].mxu0
    %718 = vmatprep.mubr.f32.mxu0 0.0
    %719 = vmatmul.mubr.f32.gmra.mrb[0].mxu0 %v366
    %v720 = vpop.f32.mrb[0].mxu0
    %v721 = vadd.f32 %v632, %v720
    %v722 = vpop.f32.mrb[0].mxu0
    %723 = vmatprep.mubr.f32.mxu0 0.0
    %724 = vmatmul.mubr.f32.gmra.mrb[0].mxu0 %v369
    %v725 = vpop.f32.mrb[0].mxu0
    %v726 = vadd.f32 %v632, %v725
    %v727 = vpop.f32.mrb[0].mxu0
    %728 = vmatprep.mubr.f32.mxu0 0.0
    %729 = vmatmul.mubr.f32.gmra.mrb[0].mxu0 %v372
    %v730 = vpop.f32.mrb[0].mxu0
    %v731 = vadd.f32 %v632, %v730
    %v732 = vpop.f32.mrb[0].mxu0
    %733 = vmatprep.mubr.f32.mxu0 0.0
    %734 = vmatmul.mubr.f32.gmra.mrb[0].mxu0 %v375
    %v735 = vpop.f32.mrb[0].mxu0
    %v736 = vadd.f32 %v632, %v735
    %v737 = vpop.f32.mrb[0].mxu0
    %738 = vdwg.mxu0
    %v739 = vld [vmem:[%s8] sm:$0xff]
    %v740 = vld [vmem:[%s8 + $0x8] sm:$0xff]
    %v741 = vld [vmem:[%s8 + $0x10] sm:$0xff]
    %v742 = vld [vmem:[%s8 + $0x18] sm:$0xff]
    %v743 = vld [vmem:[%s8 + $0x20] sm:$0xff]
    %v744 = vld [vmem:[%s8 + $0x28] sm:$0xff]
    %v745 = vld [vmem:[%s8 + $0x30] sm:$0xff]
    %v746 = vld [vmem:[%s8 + $0x38] sm:$0xff]
    %v748 = vsel %vm352, %v701, 0
    %v751 = vsel %vm352, %v706, 0
    %v754 = vsel %vm352, %v711, 0
    %v757 = vsel %vm352, %v716, 0
    %v760 = vsel %vm352, %v721, 0
    %v763 = vsel %vm352, %v726, 0
    %v766 = vsel %vm352, %v731, 0
    %v769 = vsel %vm352, %v736, 0
    %771 = vmatprep.subr.mxu0 0.0
    %772 = vmatpush1.msra.mxu0 %v739
    %773 = vmatprep.subr.mxu0 0.0
    %774 = vmatpush1.msra.mxu0 %v740
    %775 = vmatprep.subr.mxu0 0.0
    %776 = vmatpush1.msra.mxu0 %v741
    %777 = vmatprep.subr.mxu0 0.0
    %778 = vmatpush1.msra.mxu0 %v742
    %779 = vmatprep.subr.mxu0 0.0
    %780 = vmatpush1.msra.mxu0 %v743
    %781 = vmatprep.subr.mxu0 0.0
    %782 = vmatpush1.msra.mxu0 %v744
    %783 = vmatprep.subr.mxu0 0.0
    %784 = vmatpush1.msra.mxu0 %v745
    %785 = vmatprep.subr.mxu0 0.0
    %786 = vmatpush1.msra.mxu0 %v746
    %787 = vmatprep.subr.mxu0 0.0
    %788 = vmatpush1.msra.mxu0 0.0
    %789 = vmatprep.subr.mxu0 0.0
    %790 = vmatpush1.msra.mxu0 0.0
    %791 = vmatprep.subr.mxu0 0.0
    %792 = vmatpush1.msra.mxu0 0.0
    %793 = vmatprep.subr.mxu0 0.0
    %794 = vmatpush1.msra.mxu0 0.0
    %795 = vmatprep.subr.mxu0 0.0
    %796 = vmatpush1.msra.mxu0 0.0
    %797 = vmatprep.subr.mxu0 0.0
    %798 = vmatpush1.msra.mxu0 0.0
    %799 = vmatprep.subr.mxu0 0.0
    %800 = vmatpush1.msra.mxu0 0.0
    %801 = vmatprep.subr.mxu0 0.0
    %802 = vmatpush1.msra.mxu0 0.0
    %803 = vmatprep.subr.mxu0 0.0
    %804 = vmatpush1.msra.mxu0 0.0
    %805 = vmatprep.subr.mxu0 0.0
    %806 = vmatpush1.msra.mxu0 0.0
    %807 = vmatprep.subr.mxu0 0.0
    %808 = vmatpush1.msra.mxu0 0.0
    %809 = vmatprep.subr.mxu0 0.0
    %810 = vmatpush1.msra.mxu0 0.0
    %811 = vmatprep.subr.mxu0 0.0
    %812 = vmatpush1.msra.mxu0 0.0
    %813 = vmatprep.subr.mxu0 0.0
    %814 = vmatpush1.msra.mxu0 0.0
    %815 = vmatprep.subr.mxu0 0.0
    %816 = vmatpush1.msra.mxu0 0.0
    %817 = vmatprep.subr.mxu0 0.0
    %818 = vmatpush1.msra.mxu0 0.0
    %819 = vmatprep.subr.mxu0 0.0
    %820 = vmatpush1.msra.mxu0 0.0
    %821 = vmatprep.subr.mxu0 0.0
    %822 = vmatpush1.msra.mxu0 0.0
    %823 = vmatprep.subr.mxu0 0.0
    %824 = vmatpush1.msra.mxu0 0.0
    %825 = vmatprep.subr.mxu0 0.0
    %826 = vmatpush1.msra.mxu0 0.0
    %827 = vmatprep.subr.mxu0 0.0
    %828 = vmatpush1.msra.mxu0 0.0
    %829 = vmatprep.subr.mxu0 0.0
    %830 = vmatpush1.msra.mxu0 0.0
    %831 = vmatprep.subr.mxu0 0.0
    %832 = vmatpush1.msra.mxu0 0.0
    %833 = vmatprep.subr.mxu0 0.0
    %834 = vmatpush1.msra.mxu0 0.0
    %835 = vmatprep.mubr.f32.mxu0 0.0
    %836 = vmatmul.mubr.f32.gmra.mrb[0].mxu0 %v748
    %v837 = vpop.f32.mrb[0].mxu0
    %v838 = vadd.f32 0.0, %v837
    %v839 = vpop.f32.mrb[0].mxu0
    %840 = vmatprep.mubr.f32.mxu0 0.0
    %841 = vmatmul.mubr.f32.gmra.mrb[0].mxu0 %v751
    %v842 = vpop.f32.mrb[0].mxu0
    %v843 = vadd.f32 0.0, %v842
    %v844 = vpop.f32.mrb[0].mxu0
    %845 = vmatprep.mubr.f32.mxu0 0.0
    %846 = vmatmul.mubr.f32.gmra.mrb[0].mxu0 %v754
    %v847 = vpop.f32.mrb[0].mxu0
    %v848 = vadd.f32 0.0, %v847
    %v849 = vpop.f32.mrb[0].mxu0
    %850 = vmatprep.mubr.f32.mxu0 0.0
    %851 = vmatmul.mubr.f32.gmra.mrb[0].mxu0 %v757
    %v852 = vpop.f32.mrb[0].mxu0
    %v853 = vadd.f32 0.0, %v852
    %v854 = vpop.f32.mrb[0].mxu0
    %855 = vmatprep.mubr.f32.mxu0 0.0
    %856 = vmatmul.mubr.f32.gmra.mrb[0].mxu0 %v760
    %v857 = vpop.f32.mrb[0].mxu0
    %v858 = vadd.f32 0.0, %v857
    %v859 = vpop.f32.mrb[0].mxu0
    %860 = vmatprep.mubr.f32.mxu0 0.0
    %861 = vmatmul.mubr.f32.gmra.mrb[0].mxu0 %v763
    %v862 = vpop.f32.mrb[0].mxu0
    %v863 = vadd.f32 0.0, %v862
    %v864 = vpop.f32.mrb[0].mxu0
    %865 = vmatprep.mubr.f32.mxu0 0.0
    %866 = vmatmul.mubr.f32.gmra.mrb[0].mxu0 %v766
    %v867 = vpop.f32.mrb[0].mxu0
    %v868 = vadd.f32 0.0, %v867
    %v869 = vpop.f32.mrb[0].mxu0
    %870 = vmatprep.mubr.f32.mxu0 0.0
    %871 = vmatmul.mubr.f32.gmra.mrb[0].mxu0 %v769
    %v872 = vpop.f32.mrb[0].mxu0
    %v873 = vadd.f32 0.0, %v872
    %v874 = vpop.f32.mrb[0].mxu0
    %875 = vdwg.mxu0
    %v876 = vld [vmem:[%s9] sm:$0x1]
    %v878 = vlaneseq
    %v879 = vshrl.u32 %v878, 7
    %v880 = vsub.s32 0, %v879
    %v881 = vrot.slane %v876, %v880
    %883 = vmatprep.subr.mxu0 0.0
    %884 = vmatpush1.msra.mxu0 %v838
    %885 = vmatprep.subr.mxu0 0.0
    %886 = vmatpush1.msra.mxu0 %v843
    %887 = vmatprep.subr.mxu0 0.0
    %888 = vmatpush1.msra.mxu0 %v848
    %889 = vmatprep.subr.mxu0 0.0
    %890 = vmatpush1.msra.mxu0 %v853
    %891 = vmatprep.subr.mxu0 0.0
    %892 = vmatpush1.msra.mxu0 %v858
    %893 = vmatprep.subr.mxu0 0.0
    %894 = vmatpush1.msra.mxu0 %v863
    %895 = vmatprep.subr.mxu0 0.0
    %896 = vmatpush1.msra.mxu0 %v868
    %897 = vmatprep.subr.mxu0 0.0
    %898 = vmatpush1.msra.mxu0 %v873
    %899 = vmatprep.subr.mxu0 0.0
    %900 = vmatpush1.msra.mxu0 0.0
    %901 = vmatprep.subr.mxu0 0.0
    %902 = vmatpush1.msra.mxu0 0.0
    %903 = vmatprep.subr.mxu0 0.0
    %904 = vmatpush1.msra.mxu0 0.0
    %905 = vmatprep.subr.mxu0 0.0
    %906 = vmatpush1.msra.mxu0 0.0
    %907 = vmatprep.subr.mxu0 0.0
    %908 = vmatpush1.msra.mxu0 0.0
    %909 = vmatprep.subr.mxu0 0.0
    %910 = vmatpush1.msra.mxu0 0.0
    %911 = vmatprep.subr.mxu0 0.0
    %912 = vmatpush1.msra.mxu0 0.0
    %913 = vmatprep.subr.mxu0 0.0
    %914 = vmatpush1.msra.mxu0 0.0
    %915 = vmatprep.subr.mxu0 0.0
    %916 = vmatpush1.msra.mxu0 0.0
    %917 = vmatprep.subr.mxu0 0.0
    %918 = vmatpush1.msra.mxu0 0.0
    %919 = vmatprep.subr.mxu0 0.0
    %920 = vmatpush1.msra.mxu0 0.0
    %921 = vmatprep.subr.mxu0 0.0
    %922 = vmatpush1.msra.mxu0 0.0
    %923 = vmatprep.subr.mxu0 0.0
    %924 = vmatpush1.msra.mxu0 0.0
    %925 = vmatprep.subr.mxu0 0.0
    %926 = vmatpush1.msra.mxu0 0.0
    %927 = vmatprep.subr.mxu0 0.0
    %928 = vmatpush1.msra.mxu0 0.0
    %929 = vmatprep.subr.mxu0 0.0
    %930 = vmatpush1.msra.mxu0 0.0
    %931 = vmatprep.subr.mxu0 0.0
    %932 = vmatpush1.msra.mxu0 0.0
    %933 = vmatprep.subr.mxu0 0.0
    %934 = vmatpush1.msra.mxu0 0.0
    %935 = vmatprep.subr.mxu0 0.0
    %936 = vmatpush1.msra.mxu0 0.0
    %937 = vmatprep.subr.mxu0 0.0
    %938 = vmatpush1.msra.mxu0 0.0
    %939 = vmatprep.subr.mxu0 0.0
    %940 = vmatpush1.msra.mxu0 0.0
    %941 = vmatprep.subr.mxu0 0.0
    %942 = vmatpush1.msra.mxu0 0.0
    %943 = vmatprep.subr.mxu0 0.0
    %944 = vmatpush1.msra.mxu0 0.0
    %945 = vmatprep.subr.mxu0 0.0
    %946 = vmatpush1.msra.mxu0 0.0
    %947 = vmatprep.mubr.f32.mxu0 0.0
    %948 = vmatmul.mubr.f32.gmra.mrb[0].mxu0 %v354
    %v949 = vpop.f32.mrb[0].mxu0
    %v950 = vadd.f32 %v881, %v949
    %v951 = vpop.f32.mrb[0].mxu0
    %952 = vmatprep.mubr.f32.mxu0 0.0
    %953 = vmatmul.mubr.f32.gmra.mrb[0].mxu0 %v357
    %v954 = vpop.f32.mrb[0].mxu0
    %v955 = vadd.f32 %v881, %v954
    %v956 = vpop.f32.mrb[0].mxu0
    %957 = vmatprep.mubr.f32.mxu0 0.0
    %958 = vmatmul.mubr.f32.gmra.mrb[0].mxu0 %v360
    %v959 = vpop.f32.mrb[0].mxu0
    %v960 = vadd.f32 %v881, %v959
    %v961 = vpop.f32.mrb[0].mxu0
    %962 = vmatprep.mubr.f32.mxu0 0.0
    %963 = vmatmul.mubr.f32.gmra.mrb[0].mxu0 %v363
    %v964 = vpop.f32.mrb[0].mxu0
    %v965 = vadd.f32 %v881, %v964
    %v966 = vpop.f32.mrb[0].mxu0
    %967 = vmatprep.mubr.f32.mxu0 0.0
    %968 = vmatmul.mubr.f32.gmra.mrb[0].mxu0 %v366
    %v969 = vpop.f32.mrb[0].mxu0
    %v970 = vadd.f32 %v881, %v969
    %v971 = vpop.f32.mrb[0].mxu0
    %972 = vmatprep.mubr.f32.mxu0 0.0
    %973 = vmatmul.mubr.f32.gmra.mrb[0].mxu0 %v369
    %v974 = vpop.f32.mrb[0].mxu0
    %v975 = vadd.f32 %v881, %v974
    %v976 = vpop.f32.mrb[0].mxu0
    %977 = vmatprep.mubr.f32.mxu0 0.0
    %978 = vmatmul.mubr.f32.gmra.mrb[0].mxu0 %v372
    %v979 = vpop.f32.mrb[0].mxu0
    %v980 = vadd.f32 %v881, %v979
    %v981 = vpop.f32.mrb[0].mxu0
    %982 = vmatprep.mubr.f32.mxu0 0.0
    %983 = vmatmul.mubr.f32.gmra.mrb[0].mxu0 %v375
    %v984 = vpop.f32.mrb[0].mxu0
    %v985 = vadd.f32 %v881, %v984
    %v986 = vpop.f32.mrb[0].mxu0
    %987 = vdwg.mxu0
    %v988 = vmax.f32 %v950, 0.0
    %v989 = vmax.f32 %v955, 0.0
    %v990 = vmax.f32 %v960, 0.0
    %v991 = vmax.f32 %v965, 0.0
    %v992 = vmax.f32 %v970, 0.0
    %v993 = vmax.f32 %v975, 0.0
    %v994 = vmax.f32 %v980, 0.0
    %v995 = vmax.f32 %v985, 0.0
    %v996 = vld [vmem:[%s10] sm:$0xff]
    %v997 = vld [vmem:[%s10 + $0x8] sm:$0xff]
    %v998 = vld [vmem:[%s10 + $0x10] sm:$0xff]
    %v999 = vld [vmem:[%s10 + $0x18] sm:$0xff]
    %vm1000 = vcmask 261120
    %v1002 = vsel %vm1000, %v988, 0
    %v1005 = vsel %vm1000, %v989, 0
    %v1008 = vsel %vm1000, %v990, 0
    %v1011 = vsel %vm1000, %v991, 0
    %v1014 = vsel %vm1000, %v992, 0
    %v1017 = vsel %vm1000, %v993, 0
    %v1020 = vsel %vm1000, %v994, 0
    %v1023 = vsel %vm1000, %v995, 0
    %1025 = vmatprep.subr.mxu0 0.0
    %1026 = vmatpush1.msra.mxu0 %v996
    %1027 = vmatprep.subr.mxu0 0.0
    %1028 = vmatpush1.msra.mxu0 %v997
    %1029 = vmatprep.subr.mxu0 0.0
    %1030 = vmatpush1.msra.mxu0 %v998
    %1031 = vmatprep.subr.mxu0 0.0
    %1032 = vmatpush1.msra.mxu0 %v999
    %1033 = vmatprep.subr.mxu0 0.0
    %1034 = vmatpush1.msra.mxu0 0.0
    %1035 = vmatprep.subr.mxu0 0.0
    %1036 = vmatpush1.msra.mxu0 0.0
    %1037 = vmatprep.subr.mxu0 0.0
    %1038 = vmatpush1.msra.mxu0 0.0
    %1039 = vmatprep.subr.mxu0 0.0
    %1040 = vmatpush1.msra.mxu0 0.0
    %1041 = vmatprep.subr.mxu0 0.0
    %1042 = vmatpush1.msra.mxu0 0.0
    %1043 = vmatprep.subr.mxu0 0.0
    %1044 = vmatpush1.msra.mxu0 0.0
    %1045 = vmatprep.subr.mxu0 0.0
    %1046 = vmatpush1.msra.mxu0 0.0
    %1047 = vmatprep.subr.mxu0 0.0
    %1048 = vmatpush1.msra.mxu0 0.0
    %1049 = vmatprep.subr.mxu0 0.0
    %1050 = vmatpush1.msra.mxu0 0.0
    %1051 = vmatprep.subr.mxu0 0.0
    %1052 = vmatpush1.msra.mxu0 0.0
    %1053 = vmatprep.subr.mxu0 0.0
    %1054 = vmatpush1.msra.mxu0 0.0
    %1055 = vmatprep.subr.mxu0 0.0
    %1056 = vmatpush1.msra.mxu0 0.0
    %1057 = vmatprep.subr.mxu0 0.0
    %1058 = vmatpush1.msra.mxu0 0.0
    %1059 = vmatprep.subr.mxu0 0.0
    %1060 = vmatpush1.msra.mxu0 0.0
    %1061 = vmatprep.subr.mxu0 0.0
    %1062 = vmatpush1.msra.mxu0 0.0
    %1063 = vmatprep.subr.mxu0 0.0
    %1064 = vmatpush1.msra.mxu0 0.0
    %1065 = vmatprep.subr.mxu0 0.0
    %1066 = vmatpush1.msra.mxu0 0.0
    %1067 = vmatprep.subr.mxu0 0.0
    %1068 = vmatpush1.msra.mxu0 0.0
    %1069 = vmatprep.subr.mxu0 0.0
    %1070 = vmatpush1.msra.mxu0 0.0
    %1071 = vmatprep.subr.mxu0 0.0
    %1072 = vmatpush1.msra.mxu0 0.0
    %1073 = vmatprep.subr.mxu0 0.0
    %1074 = vmatpush1.msra.mxu0 0.0
    %1075 = vmatprep.subr.mxu0 0.0
    %1076 = vmatpush1.msra.mxu0 0.0
    %1077 = vmatprep.subr.mxu0 0.0
    %1078 = vmatpush1.msra.mxu0 0.0
    %1079 = vmatprep.subr.mxu0 0.0
    %1080 = vmatpush1.msra.mxu0 0.0
    %1081 = vmatprep.subr.mxu0 0.0
    %1082 = vmatpush1.msra.mxu0 0.0
    %1083 = vmatprep.subr.mxu0 0.0
    %1084 = vmatpush1.msra.mxu0 0.0
    %1085 = vmatprep.subr.mxu0 0.0
    %1086 = vmatpush1.msra.mxu0 0.0
    %1087 = vmatprep.subr.mxu0 0.0
    %1088 = vmatpush1.msra.mxu0 0.0
    %1089 = vmatprep.mubr.f32.mxu0 0.0
    %1090 = vmatmul.mubr.f32.gmra.mrb[0].mxu0 %v1002
    %v1091 = vpop.f32.mrb[0].mxu0
    %v1092 = vadd.f32 0.0, %v1091
    %v1093 = vpop.f32.mrb[0].mxu0
    %1094 = vmatprep.mubr.f32.mxu0 0.0
    %1095 = vmatmul.mubr.f32.gmra.mrb[0].mxu0 %v1005
    %v1096 = vpop.f32.mrb[0].mxu0
    %v1097 = vadd.f32 0.0, %v1096
    %v1098 = vpop.f32.mrb[0].mxu0
    %1099 = vmatprep.mubr.f32.mxu0 0.0
    %1100 = vmatmul.mubr.f32.gmra.mrb[0].mxu0 %v1008
    %v1101 = vpop.f32.mrb[0].mxu0
    %v1102 = vadd.f32 0.0, %v1101
    %v1103 = vpop.f32.mrb[0].mxu0
    %1104 = vmatprep.mubr.f32.mxu0 0.0
    %1105 = vmatmul.mubr.f32.gmra.mrb[0].mxu0 %v1011
    %v1106 = vpop.f32.mrb[0].mxu0
    %v1107 = vadd.f32 0.0, %v1106
    %v1108 = vpop.f32.mrb[0].mxu0
    %1109 = vmatprep.mubr.f32.mxu0 0.0
    %1110 = vmatmul.mubr.f32.gmra.mrb[0].mxu0 %v1014
    %v1111 = vpop.f32.mrb[0].mxu0
    %v1112 = vadd.f32 0.0, %v1111
    %v1113 = vpop.f32.mrb[0].mxu0
    %1114 = vmatprep.mubr.f32.mxu0 0.0
    %1115 = vmatmul.mubr.f32.gmra.mrb[0].mxu0 %v1017
    %v1116 = vpop.f32.mrb[0].mxu0
    %v1117 = vadd.f32 0.0, %v1116
    %v1118 = vpop.f32.mrb[0].mxu0
    %1119 = vmatprep.mubr.f32.mxu0 0.0
    %1120 = vmatmul.mubr.f32.gmra.mrb[0].mxu0 %v1020
    %v1121 = vpop.f32.mrb[0].mxu0
    %v1122 = vadd.f32 0.0, %v1121
    %v1123 = vpop.f32.mrb[0].mxu0
    %1124 = vmatprep.mubr.f32.mxu0 0.0
    %1125 = vmatmul.mubr.f32.gmra.mrb[0].mxu0 %v1023
    %v1126 = vpop.f32.mrb[0].mxu0
    %v1127 = vadd.f32 0.0, %v1126
    %v1128 = vpop.f32.mrb[0].mxu0
    %1129 = vdwg.mxu0
    %v1130 = vld [vmem:[%s11] sm:$0x1]
    %v1132 = vlaneseq
    %v1133 = vshrl.u32 %v1132, 7
    %v1134 = vsub.s32 0, %v1133
    %v1135 = vrot.slane %v1130, %v1134
    %1137 = vmatprep.subr.mxu0 0.0
    %1138 = vmatpush1.msra.mxu0 %v1092
    %1139 = vmatprep.subr.mxu0 0.0
    %1140 = vmatpush1.msra.mxu0 %v1097
    %1141 = vmatprep.subr.mxu0 0.0
    %1142 = vmatpush1.msra.mxu0 %v1102
    %1143 = vmatprep.subr.mxu0 0.0
    %1144 = vmatpush1.msra.mxu0 %v1107
    %1145 = vmatprep.subr.mxu0 0.0
    %1146 = vmatpush1.msra.mxu0 %v1112
    %1147 = vmatprep.subr.mxu0 0.0
    %1148 = vmatpush1.msra.mxu0 %v1117
    %1149 = vmatprep.subr.mxu0 0.0
    %1150 = vmatpush1.msra.mxu0 %v1122
    %1151 = vmatprep.subr.mxu0 0.0
    %1152 = vmatpush1.msra.mxu0 %v1127
    %1153 = vmatprep.subr.mxu0 0.0
    %1154 = vmatpush1.msra.mxu0 0.0
    %1155 = vmatprep.subr.mxu0 0.0
    %1156 = vmatpush1.msra.mxu0 0.0
    %1157 = vmatprep.subr.mxu0 0.0
    %1158 = vmatpush1.msra.mxu0 0.0
    %1159 = vmatprep.subr.mxu0 0.0
    %1160 = vmatpush1.msra.mxu0 0.0
    %1161 = vmatprep.subr.mxu0 0.0
    %1162 = vmatpush1.msra.mxu0 0.0
    %1163 = vmatprep.subr.mxu0 0.0
    %1164 = vmatpush1.msra.mxu0 0.0
    %1165 = vmatprep.subr.mxu0 0.0
    %1166 = vmatpush1.msra.mxu0 0.0
    %1167 = vmatprep.subr.mxu0 0.0
    %1168 = vmatpush1.msra.mxu0 0.0
    %1169 = vmatprep.subr.mxu0 0.0
    %1170 = vmatpush1.msra.mxu0 0.0
    %1171 = vmatprep.subr.mxu0 0.0
    %1172 = vmatpush1.msra.mxu0 0.0
    %1173 = vmatprep.subr.mxu0 0.0
    %1174 = vmatpush1.msra.mxu0 0.0
    %1175 = vmatprep.subr.mxu0 0.0
    %1176 = vmatpush1.msra.mxu0 0.0
    %1177 = vmatprep.subr.mxu0 0.0
    %1178 = vmatpush1.msra.mxu0 0.0
    %1179 = vmatprep.subr.mxu0 0.0
    %1180 = vmatpush1.msra.mxu0 0.0
    %1181 = vmatprep.subr.mxu0 0.0
    %1182 = vmatpush1.msra.mxu0 0.0
    %1183 = vmatprep.subr.mxu0 0.0
    %1184 = vmatpush1.msra.mxu0 0.0
    %1185 = vmatprep.subr.mxu0 0.0
    %1186 = vmatpush1.msra.mxu0 0.0
    %1187 = vmatprep.subr.mxu0 0.0
    %1188 = vmatpush1.msra.mxu0 0.0
    %1189 = vmatprep.subr.mxu0 0.0
    %1190 = vmatpush1.msra.mxu0 0.0
    %1191 = vmatprep.subr.mxu0 0.0
    %1192 = vmatpush1.msra.mxu0 0.0
    %1193 = vmatprep.subr.mxu0 0.0
    %1194 = vmatpush1.msra.mxu0 0.0
    %1195 = vmatprep.subr.mxu0 0.0
    %1196 = vmatpush1.msra.mxu0 0.0
    %1197 = vmatprep.subr.mxu0 0.0
    %1198 = vmatpush1.msra.mxu0 0.0
    %1199 = vmatprep.subr.mxu0 0.0
    %1200 = vmatpush1.msra.mxu0 0.0
    %1201 = vmatprep.mubr.f32.mxu0 0.0
    %1202 = vmatmul.mubr.f32.gmra.mrb[0].mxu0 %v354
    %v1203 = vpop.f32.mrb[0].mxu0
    %v1204 = vadd.f32 %v1135, %v1203
    %v1205 = vpop.f32.mrb[0].mxu0
    %1206 = vmatprep.mubr.f32.mxu0 0.0
    %1207 = vmatmul.mubr.f32.gmra.mrb[0].mxu0 %v357
    %v1208 = vpop.f32.mrb[0].mxu0
    %v1209 = vadd.f32 %v1135, %v1208
    %v1210 = vpop.f32.mrb[0].mxu0
    %1211 = vmatprep.mubr.f32.mxu0 0.0
    %1212 = vmatmul.mubr.f32.gmra.mrb[0].mxu0 %v360
    %v1213 = vpop.f32.mrb[0].mxu0
    %v1214 = vadd.f32 %v1135, %v1213
    %v1215 = vpop.f32.mrb[0].mxu0
    %1216 = vmatprep.mubr.f32.mxu0 0.0
    %1217 = vmatmul.mubr.f32.gmra.mrb[0].mxu0 %v363
    %v1218 = vpop.f32.mrb[0].mxu0
    %v1219 = vadd.f32 %v1135, %v1218
    %v1220 = vpop.f32.mrb[0].mxu0
    %1221 = vmatprep.mubr.f32.mxu0 0.0
    %1222 = vmatmul.mubr.f32.gmra.mrb[0].mxu0 %v366
    %v1223 = vpop.f32.mrb[0].mxu0
    %v1224 = vadd.f32 %v1135, %v1223
    %v1225 = vpop.f32.mrb[0].mxu0
    %1226 = vmatprep.mubr.f32.mxu0 0.0
    %1227 = vmatmul.mubr.f32.gmra.mrb[0].mxu0 %v369
    %v1228 = vpop.f32.mrb[0].mxu0
    %v1229 = vadd.f32 %v1135, %v1228
    %v1230 = vpop.f32.mrb[0].mxu0
    %1231 = vmatprep.mubr.f32.mxu0 0.0
    %1232 = vmatmul.mubr.f32.gmra.mrb[0].mxu0 %v372
    %v1233 = vpop.f32.mrb[0].mxu0
    %v1234 = vadd.f32 %v1135, %v1233
    %v1235 = vpop.f32.mrb[0].mxu0
    %1236 = vmatprep.mubr.f32.mxu0 0.0
    %1237 = vmatmul.mubr.f32.gmra.mrb[0].mxu0 %v375
    %v1238 = vpop.f32.mrb[0].mxu0
    %v1239 = vadd.f32 %v1135, %v1238
    %v1240 = vpop.f32.mrb[0].mxu0
    %1241 = vdwg.mxu0
    %1242 = vst.msk [vmem:[%s12] sm:$0xff] %vm1000, %v1204
    %1243 = vst.msk [vmem:[%s12 + $0x8] sm:$0xff] %vm1000, %v1209
    %1244 = vst.msk [vmem:[%s12 + $0x10] sm:$0xff] %vm1000, %v1214
    %1245 = vst.msk [vmem:[%s12 + $0x18] sm:$0xff] %vm1000, %v1219
    %1246 = vst.msk [vmem:[%s12 + $0x20] sm:$0xff] %vm1000, %v1224
    %1247 = vst.msk [vmem:[%s12 + $0x28] sm:$0xff] %vm1000, %v1229
    %1248 = vst.msk [vmem:[%s12 + $0x30] sm:$0xff] %vm1000, %v1234
    %1249 = vst.msk [vmem:[%s12 + $0x38] sm:$0xff] %vm1000, %v1239
    // Predicated region
    $region54: #{dgl_gcn_forward.1} parent=1 // pred_check
      _
    $region55: #{dgl_gcn_forward.1} parent=1 // pred_check_branch
      %1251 = sbr.rel (0) target = $region57
    $region56: #{dgl_gcn_forward.1} parent=1 // pred_region
      _
    $region57: #{dgl_gcn_forward.1} parent=1 // pred_fallthru
      _
    // Predicated region
    $region58: #{dgl_gcn_forward.1} parent=1 // pred_check
      _
    $region59: #{dgl_gcn_forward.1} parent=1 // pred_check_branch
      %1253 = sbr.rel (0) target = $region61
    $region60: #{dgl_gcn_forward.1} parent=1 // pred_region
      _
    $region61: #{dgl_gcn_forward.1} parent=1 // pred_fallthru
      _
    %1254 = vsyncpa [#allocation3], 1

</llo_original>
